<compile_context>
chip_gen: v7x
topology: tpu7x:2x2x1
jax: 0.10.0
libtpu: 0.0.40
codegen_flags: <defaults>
</compile_context>

<pallas_src>
import jax
import jax.numpy as jnp
from jax.experimental import pallas as pl
from jax.experimental.pallas import tpu as pltpu

_LANES = 128  # TPU vreg lane width


def _round_up(a: int, b: int) -> int:
    return ((a + b - 1) // b) * b


def _cdiv(a: int, b: int) -> int:
    return (a + b - 1) // b


def _linear_interleave_kernel(p_ref, b_ref, x_ref, out_ref):
    # p_ref:   (128, 256) f32 VMEM, constant across the grid: P[c, 2c+f] = W[f, 0]
    # b_ref:   (1, 256)   f32 VMEM, constant: [b0, b1, b0, b1, ...]
    # x_ref:   (tr, 128)  f32 lane-dense input tile (x element i = x_ref[i // 128, i % 128])
    # out_ref: (tr, 256)  f32 lane-dense output tile; out_ref[r, 2c+f] = y_f(x_ref[r, c]),
    #          i.e. the row-major flattening of this tile is exactly the (tr*128, 2) output.
    #
    # One small MXU matmul both applies the weights and performs the even/odd lane
    # interleave; with only ~512 MXU FLOPs per input element it stays hidden under the
    # HBM DMA of this bandwidth-bound op.  Exact: each output is a single x*w product
    # (all other terms multiply by 0.0), then an f32 bias add on the VPU.
    out_ref[...] = (
        jnp.dot(x_ref[...], p_ref[...], preferred_element_type=jnp.float32)
        + b_ref[...]
    )


def _choose_tiling(rows: int, tile_rows: int):
    """Pick (tile_rows, padded_rows, grid) for a lane-dense (rows, 128) input view."""
    tile_rows = max(8, _round_up(tile_rows, 8))
    # At least 2 grid steps when there is enough work, so the "parallel" axis can be
    # sharded across TensorCores on multi-TC chips (v7x); otherwise a single step.
    steps = max(_cdiv(rows, tile_rows), 2 if rows >= 16 else 1)
    tr = _round_up(_cdiv(rows, steps), 8)
    rows_padded = _round_up(rows, tr)
    return tr, rows_padded, rows_padded // tr


def formula_predictor(x, weight, bias, *, tile_rows: int = 4096):
    """x: (..., 1); weight: (2, 1) (PyTorch layout); bias: (2,).

    Returns (..., 2) float32, identical to nn.Linear(1, 2)(x) = x @ W^T + b.
    """
    batch_shape = x.shape[:-1]
    xf = x.reshape(-1).astype(jnp.float32)
    n = xf.shape[0]

    rows = max(_cdiv(n, _LANES), 1)
    tr, rows_padded, grid_rows = _choose_tiling(rows, tile_rows)
    n_padded = rows_padded * _LANES

    # Lane-dense input view.  When n already fills the padded view the reshape is free
    # (no extra HBM pass); only ragged n pays a single pad pass.
    if n == n_padded:
        x2d = xf.reshape(rows_padded, _LANES)
    else:
        x2d = jnp.pad(xf, (0, n_padded - n)).reshape(rows_padded, _LANES)

    w = weight.reshape(2).astype(jnp.float32)
    b = bias.reshape(2).astype(jnp.float32)
    # Spread/interleave matrix: P[c, 2c + f] = w[f], zero elsewhere.  (128, 256) = 128 KiB,
    # fetched once (constant index_map) and resident in VMEM for the whole grid.
    p_mat = jnp.kron(jnp.eye(_LANES, dtype=jnp.float32), w[None, :])  # (128, 256)
    bvec = jnp.tile(b, _LANES)[None, :]                               # (1, 256)

    out2d = pl.pallas_call(
        _linear_interleave_kernel,
        out_shape=jax.ShapeDtypeStruct((rows_padded, 2 * _LANES), jnp.float32),
        grid_spec=pltpu.PrefetchScalarGridSpec(
            num_scalar_prefetch=0,
            grid=(grid_rows,),
            in_specs=[
                pl.BlockSpec((_LANES, 2 * _LANES), lambda i: (0, 0)),  # P (constant)
                pl.BlockSpec((1, 2 * _LANES), lambda i: (0, 0)),       # bias (constant)
                pl.BlockSpec((tr, _LANES), lambda i: (i, 0)),          # x tile
            ],
            out_specs=pl.BlockSpec((tr, 2 * _LANES), lambda i: (i, 0)),
        ),
        compiler_params=pltpu.CompilerParams(
            dimension_semantics=("parallel",),
            # ~12 MiB of double-buffered tiles at tr=4096; raise the scoped limit so
            # v5e's 16 MiB default never forces smaller buffering.
            vmem_limit_bytes=32 * 1024 * 1024,
        ),
        cost_estimate=pl.CostEstimate(
            flops=2 * rows_padded * _LANES * (2 * _LANES),      # MXU spread-matmul
            transcendentals=0,
            bytes_accessed=12 * n_padded + (128 * 256 + 256) * 4,  # x read + fused out write
        ),
    )(p_mat, bvec, x2d)

    # Row-major flattening of out2d is already [y0(x0), y1(x0), y0(x1), y1(x1), ...].
    out_flat = out2d.reshape(-1)
    if n != n_padded:
        out_flat = out_flat[: 2 * n]
    return out_flat.reshape(batch_shape + (2,))


if __name__ == "__main__":
    key = jax.random.PRNGKey(0)
    k_x, k_w, k_b, k_x2 = jax.random.split(key, 4)

    # nn.Linear(1, 2): weight (2, 1), bias (2,); init ~ U(-1, 1) since fan_in = 1.
    weight = jax.random.uniform(k_w, (2, 1), jnp.float32, minval=-1.0, maxval=1.0)
    bias = jax.random.uniform(k_b, (2,), jnp.float32, minval=-1.0, maxval=1.0)

    # Small batch of scalar inputs, shape (N, 1) as the forward implies.
    x = jax.random.normal(k_x, (8, 1), jnp.float32)
    out = jax.block_until_ready(formula_predictor(x, weight, bias))

    # Exact elementwise reference (== x @ W^T + b since K = 1).
    ref = x * weight.reshape(-1) + bias
    assert out.shape == (8, 2)
    assert jnp.allclose(out, ref, atol=1e-5, rtol=1e-5)

    # Ragged, multi-tile batch exercising the multi-step "parallel" grid + pad path.
    x_big = jax.random.normal(k_x2, (128 * 40 + 37, 1), jnp.float32)  # (5157, 1)
    out_big = jax.block_until_ready(formula_predictor(x_big, weight, bias, tile_rows=16))
    ref_big = x_big * weight.reshape(-1) + bias
    assert out_big.shape == ref_big.shape
    assert jnp.allclose(out_big, ref_big, atol=1e-5, rtol=1e-5)

    print("KERNEL_OK")
</pallas_src>

<mosaic_0001>
module attributes {stable_mosaic.version = 11 : i64} {
  func.func @_linear_interleave_kernel(%arg0: i32, %arg1: memref<128x256xf32, #tpu.memory_space<vmem>>, %arg2: memref<1x256xf32, #tpu.memory_space<vmem>>, %arg3: memref<8x128xf32, #tpu.memory_space<vmem>>, %arg4: memref<8x256xf32, #tpu.memory_space<vmem>>) attributes {dimension_semantics = [#tpu.dimension_semantics<parallel>], iteration_bounds = array<i64: 1>, scalar_prefetch = 0 : i64, scratch_operands = 0 : i64, tpu.core_type = #tpu.core_type<tc>, window_params = [{pipeline_mode = #tpu.pipeline_mode<synchronous>, transform_indices = @transform_0, window_bounds = array<i64: 128, 256>}, {pipeline_mode = #tpu.pipeline_mode<synchronous>, transform_indices = @transform_1, window_bounds = array<i64: 1, 256>}, {transform_indices = @transform_2, window_bounds = array<i64: 8, 128>}, {transform_indices = @transform_3, window_bounds = array<i64: 8, 256>}]} {
    %c0 = arith.constant 0 : index
    %c0_0 = arith.constant 0 : index
    %0 = vector.load %arg3[%c0, %c0_0] : memref<8x128xf32, #tpu.memory_space<vmem>>, vector<8x128xf32>
    %c0_1 = arith.constant 0 : index
    %c0_2 = arith.constant 0 : index
    %1 = vector.load %arg1[%c0_1, %c0_2] : memref<128x256xf32, #tpu.memory_space<vmem>>, vector<128x256xf32>
    %cst = arith.constant dense<0.000000e+00> : vector<8x256xf32>
    %2 = tpu.matmul %0, %1, %cst {dimension_numbers = #tpu.dot_dimension_numbers<[1], [0], [0], [1], [0, 0, 1, 1], [], []>} : vector<8x128xf32>, vector<128x256xf32>, vector<8x256xf32> -> vector<8x256xf32>
    %c0_3 = arith.constant 0 : index
    %c0_4 = arith.constant 0 : index
    %3 = vector.load %arg2[%c0_3, %c0_4] : memref<1x256xf32, #tpu.memory_space<vmem>>, vector<1x256xf32>
    %4 = vector.broadcast %3 : vector<1x256xf32> to vector<8x256xf32>
    %5 = arith.addf %2, %4 : vector<8x256xf32>
    %c0_5 = arith.constant 0 : index
    %c0_6 = arith.constant 0 : index
    %6 = vector.load %arg4[%c0_5, %c0_6] : memref<8x256xf32, #tpu.memory_space<vmem>>, vector<8x256xf32>
    tpu.vector_store %arg4[%c0_5, %c0_6], %5 {strides = array<i32>} : memref<8x256xf32, #tpu.memory_space<vmem>>, vector<8x256xf32>,
    return
  }
  func.func @transform_0(%arg0: i32) -> (i32, i32) {
    %c0_i32 = arith.constant 0 : i32
    %c0_i32_0 = arith.constant 0 : i32
    %c0_i32_1 = arith.constant 0 : i32
    return %c0_i32, %c0_i32_0 : i32, i32
  }
  func.func @transform_1(%arg0: i32) -> (i32, i32) {
    %c0_i32 = arith.constant 0 : i32
    %c0_i32_0 = arith.constant 0 : i32
    %c0_i32_1 = arith.constant 0 : i32
    return %c0_i32, %c0_i32_0 : i32, i32
  }
  func.func @transform_2(%arg0: i32) -> (i32, i32) {
    %c0_i32 = arith.constant 0 : i32
    %c0_i32_0 = arith.constant 0 : i32
    return %arg0, %c0_i32 : i32, i32
  }
  func.func @transform_3(%arg0: i32) -> (i32, i32) {
    %c0_i32 = arith.constant 0 : i32
    %c0_i32_0 = arith.constant 0 : i32
    return %arg0, %c0_i32 : i32, i32
  }
}

</mosaic_0001>

<llo_original>
// kernel: tpu_custom_call.1
$region0: #{tpu_custom_call.1}
  #allocation0 [shape = 'u32[]', space=smem, size = 0x4, offset = 0x4, fixed_abs, tag = 'smem constant byte address 0x4 - core index']
  #allocation1 [shape = 'u32[144,128]{1,0:T(1,128)}', space=vmem, size = 0x12000, scoped, tag = 'internal scratch']
  %s0 = inlined_call_operand.hbm [shape: f32[128,256], index: 0, kind: input, shape index: {}]
  %s1 = inlined_call_operand.vmem [shape: f32[1,256], index: 1, kind: input, shape index: {}]
  %s2 = inlined_call_operand.hbm [shape: f32[8,128], index: 2, kind: input, shape index: {}]
  %s3 = inlined_call_operand.hbm [shape: f32[8,256], index: 3, kind: output, shape index: {}]
  %s4 = sld [smem:[#allocation0]]
  $region30: #{tpu_custom_call.1} parent=0
    _
  %s6 = ssub.s32 1, %s4
  %s7 = scalar_select 0, %s6, %s4
  $region1: #{tpu_custom_call.1} parent=0
    #allocation2 [shape = 'u8[131072]{0}', space=vmem, size = 0x20000, scoped, tag = 'input window, operand 0, single buffered']
    #allocation3 [shape = 's32[1]{0}', space=sflag, size = 0x4, scoped, tag = 'scoped memory for tpu_custom_call.1']
    #allocation4 [shape = 's32[1]{0}', space=sflag, size = 0x4, scoped, tag = 'scoped memory for tpu_custom_call.1']
    #allocation5 [shape = 'u8[4096]{0}', space=vmem, size = 0x1000, scoped, tag = 'input window, operand 2, single buffered']
    #allocation6 [shape = 's32[1]{0}', space=sflag, size = 0x4, scoped, tag = 'scoped memory for tpu_custom_call.1']
    #allocation7 [shape = 'u8[8192]{0}', space=vmem, size = 0x2000, scoped, tag = 'output window, operand 0, single buffered']
    %8 = vsyncpa [#allocation3], 0
    %9 = vsyncpa [#allocation6], 0
    %10 = vsyncpa [#allocation4], 0
    // Predicated region
    $region2: #{tpu_custom_call.1} parent=1 // pred_check
      _
    $region3: #{tpu_custom_call.1} parent=1 // pred_check_branch
      %12 = sbr.rel (0) target = $region5
    $region4: #{tpu_custom_call.1} parent=1 // pred_region
      %s14 = ssub.s32 4096, 4096
      %15 = vsyncadd [#allocation3], %s14
      %s16 = sshll.u32 [#allocation2], 4
      %s17 = int_to_ptr.vmem [resolvable:$true] %s16
      %22 = dma.hbm_to_vmem [thread:$0]  %s0, 4096, %s17, [#allocation3], 256, 256, 16
    $region5: #{tpu_custom_call.1} parent=1 // pred_fallthru
      _
    // Predicated region
    $region6: #{tpu_custom_call.1} parent=1 // pred_check
      _
    $region7: #{tpu_custom_call.1} parent=1 // pred_check_branch
      %24 = sbr.rel (0) target = $region9
    $region8: #{tpu_custom_call.1} parent=1 // pred_region
      _
    $region9: #{tpu_custom_call.1} parent=1 // pred_fallthru
      _
    // Predicated region
    $region10: #{tpu_custom_call.1} parent=1 // pred_check
      _
    $region11: #{tpu_custom_call.1} parent=1 // pred_check_branch
      %26 = sbr.rel (0) target = $region13
    $region12: #{tpu_custom_call.1} parent=1 // pred_region
      %s28 = ssub.s32 128, 128
      %29 = vsyncadd [#allocation6], %s28
      %s31 = sshll.u32 [#allocation5], 4
      %s32 = int_to_ptr.vmem [resolvable:$true] %s31
      %34 = dma.hbm_to_vmem [thread:$0]  %s2, 128, %s32, [#allocation6]
    $region13: #{tpu_custom_call.1} parent=1 // pred_fallthru
      _
    // Predicated region
    $region14: #{tpu_custom_call.1} parent=1 // pred_check
      _
    $region15: #{tpu_custom_call.1} parent=1 // pred_check_branch
      %36 = sbr.rel (0) target = $region17
    $region16: #{tpu_custom_call.1} parent=1 // pred_region
      %37 = dma.done [#allocation3], 4096
    $region17: #{tpu_custom_call.1} parent=1 // pred_fallthru
      _
    // Predicated region
    $region18: #{tpu_custom_call.1} parent=1 // pred_check
      _
    $region19: #{tpu_custom_call.1} parent=1 // pred_check_branch
      %39 = sbr.rel (0) target = $region21
    $region20: #{tpu_custom_call.1} parent=1 // pred_region
      %40 = dma.done [#allocation6], 128
    $region21: #{tpu_custom_call.1} parent=1 // pred_fallthru
      _
    %v41 = vld [vmem:[#allocation5] sm:$0xff]
    %v42 = vld [vmem:[#allocation2] sm:$0xff]
    %v43 = vld [vmem:[#allocation2 + $0x8] sm:$0xff]
    %v44 = vld [vmem:[#allocation2 + $0x10] sm:$0xff]
    %v45 = vld [vmem:[#allocation2 + $0x18] sm:$0xff]
    %v46 = vld [vmem:[#allocation2 + $0x20] sm:$0xff]
    %v47 = vld [vmem:[#allocation2 + $0x28] sm:$0xff]
    %v48 = vld [vmem:[#allocation2 + $0x30] sm:$0xff]
    %v49 = vld [vmem:[#allocation2 + $0x38] sm:$0xff]
    %v50 = vld [vmem:[#allocation2 + $0x40] sm:$0xff]
    %v51 = vld [vmem:[#allocation2 + $0x48] sm:$0xff]
    %v52 = vld [vmem:[#allocation2 + $0x50] sm:$0xff]
    %v53 = vld [vmem:[#allocation2 + $0x58] sm:$0xff]
    %v54 = vld [vmem:[#allocation2 + $0x60] sm:$0xff]
    %v55 = vld [vmem:[#allocation2 + $0x68] sm:$0xff]
    %v56 = vld [vmem:[#allocation2 + $0x70] sm:$0xff]
    %v57 = vld [vmem:[#allocation2 + $0x78] sm:$0xff]
    %v58 = vld [vmem:[#allocation2 + $0x80] sm:$0xff]
    %v59 = vld [vmem:[#allocation2 + $0x88] sm:$0xff]
    %v60 = vld [vmem:[#allocation2 + $0x90] sm:$0xff]
    %v61 = vld [vmem:[#allocation2 + $0x98] sm:$0xff]
    %v62 = vld [vmem:[#allocation2 + $0xa0] sm:$0xff]
    %v63 = vld [vmem:[#allocation2 + $0xa8] sm:$0xff]
    %v64 = vld [vmem:[#allocation2 + $0xb0] sm:$0xff]
    %v65 = vld [vmem:[#allocation2 + $0xb8] sm:$0xff]
    %v66 = vld [vmem:[#allocation2 + $0xc0] sm:$0xff]
    %v67 = vld [vmem:[#allocation2 + $0xc8] sm:$0xff]
    %v68 = vld [vmem:[#allocation2 + $0xd0] sm:$0xff]
    %v69 = vld [vmem:[#allocation2 + $0xd8] sm:$0xff]
    %v70 = vld [vmem:[#allocation2 + $0xe0] sm:$0xff]
    %v71 = vld [vmem:[#allocation2 + $0xe8] sm:$0xff]
    %v72 = vld [vmem:[#allocation2 + $0xf0] sm:$0xff]
    %v73 = vld [vmem:[#allocation2 + $0xf8] sm:$0xff]
    %v74 = vld [vmem:[%s1] sm:$0x3]
    %v76 = vlaneseq
    %v77 = vshrl.u32 %v76, 7
    %v78 = vsub.s32 0, %v77
    %v79 = vrot.slane %v74, %v78
    %v80 = vlaneseq
    %v81 = vshrl.u32 %v80, 7
    %v82 = vsub.s32 1, %v81
    %v83 = vrot.slane %v74, %v82
    %86 = vmatprep.subr.mxu0 %v43
    %87 = vmatpush1.msra.mxu0 %v42
    %88 = vmatprep.subr.mxu0 %v45
    %89 = vmatpush1.msra.mxu0 %v44
    %90 = vmatprep.subr.mxu0 %v47
    %91 = vmatpush1.msra.mxu0 %v46
    %92 = vmatprep.subr.mxu0 %v49
    %93 = vmatpush1.msra.mxu0 %v48
    %94 = vmatprep.subr.mxu0 %v51
    %95 = vmatpush1.msra.mxu0 %v50
    %96 = vmatprep.subr.mxu0 %v53
    %97 = vmatpush1.msra.mxu0 %v52
    %98 = vmatprep.subr.mxu0 %v55
    %99 = vmatpush1.msra.mxu0 %v54
    %100 = vmatprep.subr.mxu0 %v57
    %101 = vmatpush1.msra.mxu0 %v56
    %102 = vmatprep.subr.mxu0 %v59
    %103 = vmatpush1.msra.mxu0 %v58
    %104 = vmatprep.subr.mxu0 %v61
    %105 = vmatpush1.msra.mxu0 %v60
    %106 = vmatprep.subr.mxu0 %v63
    %107 = vmatpush1.msra.mxu0 %v62
    %108 = vmatprep.subr.mxu0 %v65
    %109 = vmatpush1.msra.mxu0 %v64
    %110 = vmatprep.subr.mxu0 %v67
    %111 = vmatpush1.msra.mxu0 %v66
    %112 = vmatprep.subr.mxu0 %v69
    %113 = vmatpush1.msra.mxu0 %v68
    %114 = vmatprep.subr.mxu0 %v71
    %115 = vmatpush1.msra.mxu0 %v70
    %116 = vmatprep.subr.mxu0 %v73
    %117 = vmatpush1.msra.mxu0 %v72
    %118 = vmatprep.subr.mxu0 0.0
    %119 = vmatpush1.msra.mxu0 0.0
    %120 = vmatprep.subr.mxu0 0.0
    %121 = vmatpush1.msra.mxu0 0.0
    %122 = vmatprep.subr.mxu0 0.0
    %123 = vmatpush1.msra.mxu0 0.0
    %124 = vmatprep.subr.mxu0 0.0
    %125 = vmatpush1.msra.mxu0 0.0
    %126 = vmatprep.subr.mxu0 0.0
    %127 = vmatpush1.msra.mxu0 0.0
    %128 = vmatprep.subr.mxu0 0.0
    %129 = vmatpush1.msra.mxu0 0.0
    %130 = vmatprep.subr.mxu0 0.0
    %131 = vmatpush1.msra.mxu0 0.0
    %132 = vmatprep.subr.mxu0 0.0
    %133 = vmatpush1.msra.mxu0 0.0
    %134 = vmatprep.subr.mxu0 0.0
    %135 = vmatpush1.msra.mxu0 0.0
    %136 = vmatprep.subr.mxu0 0.0
    %137 = vmatpush1.msra.mxu0 0.0
    %138 = vmatprep.subr.mxu0 0.0
    %139 = vmatpush1.msra.mxu0 0.0
    %140 = vmatprep.subr.mxu0 0.0
    %141 = vmatpush1.msra.mxu0 0.0
    %142 = vmatprep.subr.mxu0 0.0
    %143 = vmatpush1.msra.mxu0 0.0
    %144 = vmatprep.subr.mxu0 0.0
    %145 = vmatpush1.msra.mxu0 0.0
    %146 = vmatprep.subr.mxu0 0.0
    %147 = vmatpush1.msra.mxu0 0.0
    %148 = vmatprep.subr.mxu0 0.0
    %149 = vmatpush1.msra.mxu0 0.0
    %150 = vmatprep.mubr.f32.mxu0 0.0
    %151 = vmatmul.mubr.f32.gmra.mrb[0].mxu0 %v41
    %v152 = vpop.f32.mrb[0].mxu0
    %v153 = vadd.f32 %v79, %v152
    %v154 = vpop.f32.mrb[0].mxu0
    %v155 = vadd.f32 %v83, %v154
    %156 = vdwg.mxu0
    %157 = vst [vmem:[#allocation7] sm:$0xff] %v153
    %158 = vst [vmem:[#allocation7 + $0x8] sm:$0xff] %v155
    // Predicated region
    $region22: #{tpu_custom_call.1} parent=1 // pred_check
      _
    $region23: #{tpu_custom_call.1} parent=1 // pred_check_branch
      %160 = sbr.rel (0) target = $region25
    $region24: #{tpu_custom_call.1} parent=1 // pred_region
      %s162 = ssub.s32 256, 256
      %163 = vsyncadd [#allocation4], %s162
      %s165 = sshll.u32 [#allocation7], 4
      %s166 = int_to_ptr.vmem [resolvable:$true] %s165
      %168 = dma.vmem_to_hbm [thread:$0]  %s166, 256, %s3, [#allocation4]
    $region25: #{tpu_custom_call.1} parent=1 // pred_fallthru
      _
    // Predicated region
    $region26: #{tpu_custom_call.1} parent=1 // pred_check
      _
    $region27: #{tpu_custom_call.1} parent=1 // pred_check_branch
      %170 = sbr.rel (0) target = $region29
    $region28: #{tpu_custom_call.1} parent=1 // pred_region
      %171 = dma.done [#allocation4], 256
    $region29: #{tpu_custom_call.1} parent=1 // pred_fallthru
      _
    %172 = vsyncpa [#allocation3], 1
    %173 = vsyncpa [#allocation6], 1
    %174 = vsyncpa [#allocation4], 1

</llo_original>
